<compile_context>
chip_gen: v7x
topology: tpu7x:2x2x1
jax: 0.10.0
libtpu: 0.0.40
codegen_flags: <defaults>
</compile_context>

<pallas_src>
import jax
import jax.numpy as jnp
from jax.experimental import pallas as pl
from jax.experimental.pallas import tpu as pltpu


def _conv3d_block_kernel(x_ref, w_ref, scale_ref, shift_ref, o_ref):
    # x_ref:     (1, C_in, TS)   channels on sublanes, spatial on lanes
    # w_ref:     (C_out, C_in)   resident pointwise conv weight (f32)
    # scale_ref: (C_in, 1)       folded BN scale = gamma / sqrt(var + eps)
    # shift_ref: (C_in, 1)       folded BN shift = beta - mean * scale
    # o_ref:     (1, C_out, TS)
    x = x_ref[0]                                              # input dtype
    # BN + ReLU; promotes to f32 via the f32 scale/shift (no explicit cast).
    y = jnp.maximum(x * scale_ref[...] + shift_ref[...], 0.0)  # (C_in, TS)
    # Pointwise 1x1x1 conv == channel-mixing matmul, f32 accumulation.
    o_ref[0] = jnp.dot(
        w_ref[...], y, preferred_element_type=jnp.float32
    ).astype(o_ref.dtype)                                     # (C_out, TS)


def _pipeline_bytes_per_lane(C_in, C_out, itemsize):
    # Double-buffered x/out blocks + f32 intermediates (BN+ReLU result and
    # dot accumulator) per spatial lane of the tile.
    return 2 * itemsize * (C_in + C_out) + 4 * (C_in + C_out)


def _pick_spatial_tile(S, C_in, C_out, itemsize, n_batch):
    """Lane-dense spatial tile: fits a conservative VMEM budget, divides S
    (no masked remainder), and leaves >=2 grid points when N == 1 so both
    v7x TensorCores get work."""
    bytes_per_lane = _pipeline_bytes_per_lane(C_in, C_out, itemsize)
    vmem_budget = 24 * 1024 * 1024          # safe on v7x (64 MiB physical)
    max_tile = max(128, vmem_budget // bytes_per_lane)
    target = min(max_tile, 65536, S)

    # Ensure at least two grid points along a parallel axis for v7x when the
    # batch axis alone cannot provide them (no effect on v5e/v6e, 1 TC).
    if n_batch == 1 and S >= 256:
        target = min(target, S // 2)

    if S % 128 != 0:
        # Lane-dense divisor tiling impossible: take the full extent if it
        # fits the budget, otherwise fall back to a masked remainder block.
        if S <= max_tile:
            return S
        return max(128, (target // 128) * 128)

    # Largest multiple of 128 that divides S and is <= target.
    t = max(128, (target // 128) * 128)
    while t > 128 and S % t != 0:
        t -= 128
    return t


def conv3d_block_forward(x_ncdhw, conv_weight, bn_gamma, bn_beta,
                         bn_mean, bn_var, eps=1e-5):
    """Fused BN(eval) -> ReLU -> 1x1x1 Conv3d (no bias).

    x_ncdhw:      (N, C_in, D, H, W)
    conv_weight:  (C_out, C_in, 1, 1, 1)  PyTorch Conv3d weight layout
    bn_*:         (C_in,) BatchNorm3d params / running stats
    returns:      (N, C_out, D, H, W), same dtype as x
    """
    N, C_in, D, H, W = x_ncdhw.shape
    C_out = conv_weight.shape[0]
    S = D * H * W
    out_dtype = x_ncdhw.dtype
    itemsize = jnp.dtype(out_dtype).itemsize

    # Fold BN into per-channel scale/shift (inference semantics), laid out
    # (C_in, 1) so they broadcast over the lane (spatial) dimension in-kernel.
    scale = bn_gamma.astype(jnp.float32) / jnp.sqrt(
        bn_var.astype(jnp.float32) + eps)
    shift = bn_beta.astype(jnp.float32) - bn_mean.astype(jnp.float32) * scale
    scale2d = scale.reshape(C_in, 1)
    shift2d = shift.reshape(C_in, 1)

    # Pointwise conv weight as a (C_out, C_in) matmul operand (W @ x_tile).
    w_mat = conv_weight.reshape(C_out, C_in).astype(jnp.float32)

    # NCDHW -> (N, C_in, S): a pure view, no data movement.
    x_flat = x_ncdhw.reshape(N, C_in, S)

    tile_s = _pick_spatial_tile(S, C_in, C_out, itemsize, N)
    grid_s = pl.cdiv(S, tile_s)

    # Explicit VMEM limit: enough for the chosen pipeline buffers + resident
    # params with headroom, but well under v7x's 64 MiB physical VMEM.
    bytes_per_lane = _pipeline_bytes_per_lane(C_in, C_out, itemsize)
    est_vmem = bytes_per_lane * tile_s + 4 * (C_out * C_in + 2 * C_in)
    vmem_limit = int(min(max(2 * est_vmem, 32 << 20), 48 << 20))

    cost = pl.CostEstimate(
        flops=2 * N * S * C_in * C_out,
        transcendentals=0,
        bytes_accessed=itemsize * N * S * (C_in + C_out)
                       + 4 * (C_in * C_out + 2 * C_in),
    )

    out_flat = pl.pallas_call(
        _conv3d_block_kernel,
        out_shape=jax.ShapeDtypeStruct((N, C_out, S), out_dtype),
        grid_spec=pltpu.PrefetchScalarGridSpec(
            num_scalar_prefetch=0,
            grid=(N, grid_s),
            in_specs=[
                pl.BlockSpec((1, C_in, tile_s), lambda n, s: (n, 0, s)),
                pl.BlockSpec((C_out, C_in), lambda n, s: (0, 0)),   # resident
                pl.BlockSpec((C_in, 1), lambda n, s: (0, 0)),       # resident
                pl.BlockSpec((C_in, 1), lambda n, s: (0, 0)),       # resident
            ],
            out_specs=pl.BlockSpec((1, C_out, tile_s), lambda n, s: (n, 0, s)),
        ),
        compiler_params=pltpu.CompilerParams(
            dimension_semantics=("parallel", "parallel"),
            vmem_limit_bytes=vmem_limit),
        cost_estimate=cost,
    )(x_flat, w_mat, scale2d, shift2d)

    # (N, C_out, S) -> NCDHW: again a pure view.
    return out_flat.reshape(N, C_out, D, H, W)


if __name__ == "__main__":
    # Small shapes consistent with a Conv3dBlock(num_in=4, num_out=8, k=1).
    N, C_in, C_out, D, H, W = 2, 4, 8, 8, 8, 8
    key = jax.random.PRNGKey(0)
    kx, kw, kg, kb, km, kv = jax.random.split(key, 6)

    x = jax.random.normal(kx, (N, C_in, D, H, W), dtype=jnp.float32)

    # Deterministic synthetic parameters (shapes from Conv3dBlock.__init__).
    conv_weight = jax.random.normal(kw, (C_out, C_in, 1, 1, 1),
                                    dtype=jnp.float32) * 0.1
    bn_gamma = 1.0 + 0.1 * jax.random.normal(kg, (C_in,), dtype=jnp.float32)
    bn_beta = 0.1 * jax.random.normal(kb, (C_in,), dtype=jnp.float32)
    bn_mean = 0.1 * jax.random.normal(km, (C_in,), dtype=jnp.float32)
    bn_var = jnp.abs(jax.random.normal(kv, (C_in,), dtype=jnp.float32)) + 0.5

    out = conv3d_block_forward(x, conv_weight, bn_gamma, bn_beta,
                               bn_mean, bn_var)
    out = jax.block_until_ready(out)

    # Pure-JAX reference check of the fused path (inference-mode BN).
    scale = bn_gamma / jnp.sqrt(bn_var + 1e-5)
    shift = bn_beta - bn_mean * scale
    y_ref = jnp.maximum(
        x * scale[None, :, None, None, None] + shift[None, :, None, None, None],
        0.0)
    w_mat = conv_weight.reshape(C_out, C_in)
    out_ref = jnp.einsum('ncdhw,oc->nodhw', y_ref, w_mat)
    assert out.shape == (N, C_out, D, H, W)
    assert out.dtype == x.dtype
    assert jnp.allclose(out, out_ref, atol=1e-4, rtol=1e-4)

    print("KERNEL_OK")
</pallas_src>

<mosaic_0001>
module attributes {stable_mosaic.version = 11 : i64} {
  func.func @_conv3d_block_kernel(%arg0: i32, %arg1: i32, %arg2: memref<1x4x512xf32, #tpu.memory_space<vmem>>, %arg3: memref<8x4xf32, #tpu.memory_space<vmem>>, %arg4: memref<4x1xf32, #tpu.memory_space<vmem>>, %arg5: memref<4x1xf32, #tpu.memory_space<vmem>>, %arg6: memref<1x8x512xf32, #tpu.memory_space<vmem>>) attributes {dimension_semantics = [#tpu.dimension_semantics<parallel>, #tpu.dimension_semantics<parallel>], iteration_bounds = array<i64: 2, 1>, scalar_prefetch = 0 : i64, scratch_operands = 0 : i64, tpu.core_type = #tpu.core_type<tc>, window_params = [{transform_indices = @transform_0, window_bounds = array<i64: 1, 4, 512>}, {pipeline_mode = #tpu.pipeline_mode<synchronous>, transform_indices = @transform_1, window_bounds = array<i64: 8, 4>}, {pipeline_mode = #tpu.pipeline_mode<synchronous>, transform_indices = @transform_2, window_bounds = array<i64: 4, 1>}, {pipeline_mode = #tpu.pipeline_mode<synchronous>, transform_indices = @transform_3, window_bounds = array<i64: 4, 1>}, {transform_indices = @transform_4, window_bounds = array<i64: 1, 8, 512>}]} {
    %c0 = arith.constant 0 : index
    %c0_0 = arith.constant 0 : index
    %c0_1 = arith.constant 0 : index
    %0 = vector.load %arg2[%c0, %c0_0, %c0_1] : memref<1x4x512xf32, #tpu.memory_space<vmem>>, vector<1x4x512xf32>
    %1 = vector.shape_cast %0 : vector<1x4x512xf32> to vector<4x512xf32>
    %c0_2 = arith.constant 0 : index
    %c0_3 = arith.constant 0 : index
    %2 = vector.load %arg4[%c0_2, %c0_3] : memref<4x1xf32, #tpu.memory_space<vmem>>, vector<4x1xf32>
    %3 = vector.broadcast %2 : vector<4x1xf32> to vector<4x512xf32>
    %4 = arith.mulf %1, %3 : vector<4x512xf32>
    %c0_4 = arith.constant 0 : index
    %c0_5 = arith.constant 0 : index
    %5 = vector.load %arg5[%c0_4, %c0_5] : memref<4x1xf32, #tpu.memory_space<vmem>>, vector<4x1xf32>
    %6 = vector.broadcast %5 : vector<4x1xf32> to vector<4x512xf32>
    %7 = arith.addf %4, %6 : vector<4x512xf32>
    %cst = arith.constant 0.000000e+00 : f32
    %8 = vector.broadcast %cst : f32 to vector<4x512xf32>
    %9 = arith.maximumf %7, %8 : vector<4x512xf32>
    %c0_6 = arith.constant 0 : index
    %c0_7 = arith.constant 0 : index
    %10 = vector.load %arg3[%c0_6, %c0_7] : memref<8x4xf32, #tpu.memory_space<vmem>>, vector<8x4xf32>
    %cst_8 = arith.constant dense<0.000000e+00> : vector<8x512xf32>
    %11 = tpu.matmul %10, %9, %cst_8 {dimension_numbers = #tpu.dot_dimension_numbers<[1], [0], [0], [1], [0, 0, 1, 1], [], []>} : vector<8x4xf32>, vector<4x512xf32>, vector<8x512xf32> -> vector<8x512xf32>
    %c0_9 = arith.constant 0 : index
    %c0_10 = arith.constant 0 : index
    %c0_11 = arith.constant 0 : index
    %12 = vector.load %arg6[%c0_9, %c0_10, %c0_11] : memref<1x8x512xf32, #tpu.memory_space<vmem>>, vector<1x8x512xf32>
    %13 = vector.shape_cast %12 : vector<1x8x512xf32> to vector<8x512xf32>
    %14 = vector.shape_cast %11 : vector<8x512xf32> to vector<1x8x512xf32>
    tpu.vector_store %arg6[%c0_9, %c0_10, %c0_11], %14 {strides = array<i32>} : memref<1x8x512xf32, #tpu.memory_space<vmem>>, vector<1x8x512xf32>,
    return
  }
  func.func @transform_0(%arg0: i32, %arg1: i32) -> (i32, i32, i32) {
    %c0_i32 = arith.constant 0 : i32
    %c0_i32_0 = arith.constant 0 : i32
    return %arg0, %c0_i32, %arg1 : i32, i32, i32
  }
  func.func @transform_1(%arg0: i32, %arg1: i32) -> (i32, i32) {
    %c0_i32 = arith.constant 0 : i32
    %c0_i32_0 = arith.constant 0 : i32
    %c0_i32_1 = arith.constant 0 : i32
    return %c0_i32, %c0_i32_0 : i32, i32
  }
  func.func @transform_2(%arg0: i32, %arg1: i32) -> (i32, i32) {
    %c0_i32 = arith.constant 0 : i32
    %c0_i32_0 = arith.constant 0 : i32
    %c0_i32_1 = arith.constant 0 : i32
    return %c0_i32, %c0_i32_0 : i32, i32
  }
  func.func @transform_3(%arg0: i32, %arg1: i32) -> (i32, i32) {
    %c0_i32 = arith.constant 0 : i32
    %c0_i32_0 = arith.constant 0 : i32
    %c0_i32_1 = arith.constant 0 : i32
    return %c0_i32, %c0_i32_0 : i32, i32
  }
  func.func @transform_4(%arg0: i32, %arg1: i32) -> (i32, i32, i32) {
    %c0_i32 = arith.constant 0 : i32
    %c0_i32_0 = arith.constant 0 : i32
    return %arg0, %c0_i32, %arg1 : i32, i32, i32
  }
}

</mosaic_0001>

<llo_original>
// kernel: tpu_custom_call.1
$region0: #{tpu_custom_call.1}
  #allocation0 [shape = 'u32[]', space=smem, size = 0x4, offset = 0x4, fixed_abs, tag = 'smem constant byte address 0x4 - core index']
  #allocation1 [shape = 'u32[144,128]{1,0:T(1,128)}', space=vmem, size = 0x12000, scoped, tag = 'internal scratch']
  %s0 = inlined_call_operand.hbm [shape: f32[2,4,512], index: 0, kind: input, shape index: {}]
  %s1 = inlined_call_operand.vmem [shape: f32[8,4], index: 1, kind: input, shape index: {}]
  %s2 = inlined_call_operand.vmem [shape: f32[4,1], index: 2, kind: input, shape index: {}]
  %s3 = inlined_call_operand.vmem [shape: f32[4,1], index: 3, kind: input, shape index: {}]
  %s4 = inlined_call_operand.hbm [shape: f32[2,8,512], index: 4, kind: output, shape index: {}]
  %s5 = sld [smem:[#allocation0]]
  $region53: #{tpu_custom_call.1} parent=0
    _
  %s7 = ssub.s32 1, %s5
  %s8 = scalar_select 0, %s7, %s5
  $region1: #{tpu_custom_call.1} parent=0
    #allocation2 [shape = 'u8[16384]{0}', space=vmem, size = 0x4000, scoped, tag = 'input window, operand 0']
    #allocation3 [shape = 's32[2]{0}', space=sflag, size = 0x8, scoped, tag = 'scoped memory for tpu_custom_call.1']
    #allocation4 [shape = 's32[2]{0}', space=sflag, size = 0x8, scoped, tag = 'scoped memory for tpu_custom_call.1']
    #allocation5 [shape = 'u8[32768]{0}', space=vmem, size = 0x8000, scoped, tag = 'output window, operand 0']
    %9 = vsyncpa [#allocation3], 0
    %s10 = scalar_lea.sflag [#allocation3], 1
    %11 = vsyncpa %s10, 0
    %12 = vsyncpa [#allocation4], 0
    %s13 = scalar_lea.sflag [#allocation4], 1
    %14 = vsyncpa %s13, 0
    loop: start=0, step=1, limit=4
    $region2: #{tpu_custom_call.1} parent=1 // loop_pre_header
      _
    $region3: #{tpu_custom_call.1} parent=1 // loop_header
      %s16 = sphi 0, %s20
      %p17 = scmp.ge.s32.totalorder %s16, 4
      %s23 = sphi 0, %s35
      %s24 = sphi 0, %s31
      %s25 = sphi 0, %s23
      %s26 = sphi 0, %s24
      %s27 = sphi 0, %s25
      %s28 = sphi 0, %s26
      %s40 = sphi 0, %s42
      %s43 = sphi 0, %s40
      %s44 = sphi 0, %s43
      %s60 = sphi 0, %s44
      %s64 = sphi 0, %s64
      %s66 = sphi 0, %s64
      %s67 = sphi 0, %s66
      %s81 = sphi 0, %s67
      %s85 = sphi 0, %s85
      %s87 = sphi 0, %s85
      %s88 = sphi 0, %s87
      %s102 = sphi 0, %s88
      %s106 = sphi 0, %s106
      %s108 = sphi 0, %s106
      %s109 = sphi 0, %s108
      %s123 = sphi 0, %s109
      %s131 = sphi 0, %s133
      %s134 = sphi 0, %s131
      %s135 = sphi 0, %s134
      %s151 = sphi 0, %s135
    $region4: #{tpu_custom_call.1} parent=1 // loop_header_branch
      %19 = sbr.rel (%p17) target = $region8
    $region5: #{tpu_custom_call.1} parent=1 // loop_body
      %s21 = ssub.s32 %s16, 1
      %s22 = ssub.s32 %s16, 2
      %s29 = sadd.s32 1, %s24
      %p30 = scmp.ge.s32.totalorder %s29, 1
      %s31 = scalar_select %p30, 0, %s29
      %s32 = sadd.s32 1, %s23
      %s33 = scalar_select %p30, %s32, %s23
      %p34 = scmp.ge.s32.totalorder %s33, 2
      %s35 = scalar_select %p34, 0, %s33
      %s36 = ssub.s32 %s23, %s35
      %s37 = ssub.s32 %s24, %s31
      %s38 = sor.u32 %s36, %s37
      %p39 = scmp.eq.s32.totalorder %s38, 0
      %s41 = sadd.s32 %s40, 1
      %s42 = scalar_select %p39, %s40, %s41
      %p45 = pneg %p39
      %p46 = scmp.eq.s32.totalorder %s16, 1
      %p47 = por %p45, %p46
      %p48 = scmp.ne.s32.totalorder %s40, %s43
      %p49 = scmp.eq.s32.totalorder %s16, 0
      %p50 = por %p48, %p49
      %p51 = scmp.ne.s32.totalorder %s40, %s43
      %p52 = scmp.eq.s32.totalorder %s21, 1
      %p53 = por %p51, %p52
      %p54 = scmp.ne.s32.totalorder %s43, %s44
      %p55 = scmp.eq.s32.totalorder %s21, 0
      %p56 = por %p54, %p55
      %p57 = scmp.ne.s32.totalorder %s43, %s44
      %p58 = scmp.eq.s32.totalorder %s22, 1
      %p59 = por %p57, %p58
      %p61 = scmp.ne.s32.totalorder %s44, %s60
      %p62 = scmp.eq.s32.totalorder %s22, 0
      %p63 = por %p61, %p62
      %s65 = sadd.s32 %s64, 1
      %p68 = scmp.eq.s32.totalorder %s16, 1
      %p69 = scmp.ne.s32.totalorder %s64, %s66
      %p70 = scmp.eq.s32.totalorder %s16, 0
      %p71 = por %p69, %p70
      %p72 = scmp.ne.s32.totalorder %s64, %s66
      %p73 = scmp.eq.s32.totalorder %s21, 1
      %p74 = por %p72, %p73
      %p75 = scmp.ne.s32.totalorder %s66, %s67
      %p76 = scmp.eq.s32.totalorder %s21, 0
      %p77 = por %p75, %p76
      %p78 = scmp.ne.s32.totalorder %s66, %s67
      %p79 = scmp.eq.s32.totalorder %s22, 1
      %p80 = por %p78, %p79
      %p82 = scmp.ne.s32.totalorder %s67, %s81
      %p83 = scmp.eq.s32.totalorder %s22, 0
      %p84 = por %p82, %p83
      %s86 = sadd.s32 %s85, 1
      %p89 = scmp.eq.s32.totalorder %s16, 1
      %p90 = scmp.ne.s32.totalorder %s85, %s87
      %p91 = scmp.eq.s32.totalorder %s16, 0
      %p92 = por %p90, %p91
      %p93 = scmp.ne.s32.totalorder %s85, %s87
      %p94 = scmp.eq.s32.totalorder %s21, 1
      %p95 = por %p93, %p94
      %p96 = scmp.ne.s32.totalorder %s87, %s88
      %p97 = scmp.eq.s32.totalorder %s21, 0
      %p98 = por %p96, %p97
      %p99 = scmp.ne.s32.totalorder %s87, %s88
      %p100 = scmp.eq.s32.totalorder %s22, 1
      %p101 = por %p99, %p100
      %p103 = scmp.ne.s32.totalorder %s88, %s102
      %p104 = scmp.eq.s32.totalorder %s22, 0
      %p105 = por %p103, %p104
      %s107 = sadd.s32 %s106, 1
      %p110 = scmp.eq.s32.totalorder %s16, 1
      %p111 = scmp.ne.s32.totalorder %s106, %s108
      %p112 = scmp.eq.s32.totalorder %s16, 0
      %p113 = por %p111, %p112
      %p114 = scmp.ne.s32.totalorder %s106, %s108
      %p115 = scmp.eq.s32.totalorder %s21, 1
      %p116 = por %p114, %p115
      %p117 = scmp.ne.s32.totalorder %s108, %s109
      %p118 = scmp.eq.s32.totalorder %s21, 0
      %p119 = por %p117, %p118
      %p120 = scmp.ne.s32.totalorder %s108, %s109
      %p121 = scmp.eq.s32.totalorder %s22, 1
      %p122 = por %p120, %p121
      %p124 = scmp.ne.s32.totalorder %s109, %s123
      %p125 = scmp.eq.s32.totalorder %s22, 0
      %p126 = por %p124, %p125
      %s127 = ssub.s32 %s23, %s35
      %s128 = ssub.s32 %s24, %s31
      %s129 = sor.u32 %s127, %s128
      %p130 = scmp.eq.s32.totalorder %s129, 0
      %s132 = sadd.s32 %s131, 1
      %s133 = scalar_select %p130, %s131, %s132
      %p136 = pneg %p130
      %p137 = scmp.eq.s32.totalorder %s16, 1
      %p138 = por %p136, %p137
      %p139 = scmp.ne.s32.totalorder %s131, %s134
      %p140 = scmp.eq.s32.totalorder %s16, 0
      %p141 = por %p139, %p140
      %p142 = scmp.ne.s32.totalorder %s131, %s134
      %p143 = scmp.eq.s32.totalorder %s21, 1
      %p144 = por %p142, %p143
      %p145 = scmp.ne.s32.totalorder %s134, %s135
      %p146 = scmp.eq.s32.totalorder %s21, 0
      %p147 = por %p145, %p146
      %p148 = scmp.ne.s32.totalorder %s134, %s135
      %p149 = scmp.eq.s32.totalorder %s22, 1
      %p150 = por %p148, %p149
      %p152 = scmp.ne.s32.totalorder %s135, %s151
      %p153 = scmp.eq.s32.totalorder %s22, 0
      %p154 = por %p152, %p153
      %p155 = scmp.le.s32.totalorder 1, %s16
      %p156 = scmp.lt.s32.totalorder %s16, 3
      %p157 = pnand %p155, %p156
      %p158 = pneg %p157
      // Predicated region
      $region9: #{tpu_custom_call.1} parent=5 // pred_check
        _
      $region10: #{tpu_custom_call.1} parent=5 // pred_check_branch
        %160 = sbr.rel (%p157) target = $region12
      $region11: #{tpu_custom_call.1} parent=5 // pred_region
        %s161 = ssub.s32 %s16, 1
        // Predicated region
        $region13: #{tpu_custom_call.1} parent=11 // pred_check
          %p162 = pneg %p77
        $region14: #{tpu_custom_call.1} parent=11 // pred_check_branch
          %164 = sbr.rel (%p162) target = $region16
        $region15: #{tpu_custom_call.1} parent=11 // pred_region
          _
        $region16: #{tpu_custom_call.1} parent=11 // pred_fallthru
          _
        // Predicated region
        $region17: #{tpu_custom_call.1} parent=11 // pred_check
          %p165 = pneg %p98
        $region18: #{tpu_custom_call.1} parent=11 // pred_check_branch
          %167 = sbr.rel (%p165) target = $region20
        $region19: #{tpu_custom_call.1} parent=11 // pred_region
          _
        $region20: #{tpu_custom_call.1} parent=11 // pred_fallthru
          _
        // Predicated region
        $region21: #{tpu_custom_call.1} parent=11 // pred_check
          %p168 = pneg %p119
        $region22: #{tpu_custom_call.1} parent=11 // pred_check_branch
          %170 = sbr.rel (%p168) target = $region24
        $region23: #{tpu_custom_call.1} parent=11 // pred_region
          _
        $region24: #{tpu_custom_call.1} parent=11 // pred_fallthru
          _
      $region12: #{tpu_custom_call.1} parent=5 // pred_fallthru
        _
      %p171 = scmp.lt.s32.totalorder %s16, 2
      // Predicated region
      $region25: #{tpu_custom_call.1} parent=5 // pred_check
        %p172 = pneg %p171
      $region26: #{tpu_custom_call.1} parent=5 // pred_check_branch
        %174 = sbr.rel (%p172) target = $region28
      $region27: #{tpu_custom_call.1} parent=5 // pred_region
        // Predicated region
        $region29: #{tpu_custom_call.1} parent=27 // pred_check
          %p175 = pneg %p50
        $region30: #{tpu_custom_call.1} parent=27 // pred_check_branch
          %177 = sbr.rel (%p175) target = $region32
        $region31: #{tpu_custom_call.1} parent=27 // pred_region
          %s178 = sand.u32 %s40, 1
          %s179 = scalar_lea.sflag [#allocation3], %s178
          %s180 = sand.u32 %s40, 1
          %s181 = smul.addr %s180, 16
          %s182 = scalar_lea.vmem [#allocation2], %s181
          %s183 = smul.u32 4, %s24
          %s185 = ssub.s32 256, 256
          %186 = vsyncadd %s179, %s185
          %s187 = smul.addr %s23, 4
          %s188 = sadd.s32 %s183, %s187
          %s189 = smul.addr %s188, 64
          %s190 = scalar_lea.hbm %s0, %s189
          %s192 = sshll.u32 %s182, 4
          %s193 = int_to_ptr.vmem [resolvable:$true] %s192
          %195 = dma.hbm_to_vmem [thread:$0]  %s190, 256, %s193, %s179
        $region32: #{tpu_custom_call.1} parent=27 // pred_fallthru
          _
      $region28: #{tpu_custom_call.1} parent=5 // pred_fallthru
        _
      %p196 = scmp.le.s32.totalorder 1, %s16
      %p197 = scmp.lt.s32.totalorder %s16, 3
      %p198 = pnand %p196, %p197
      %p199 = pneg %p198
      // Predicated region
      $region33: #{tpu_custom_call.1} parent=5 // pred_check
        _
      $region34: #{tpu_custom_call.1} parent=5 // pred_check_branch
        %201 = sbr.rel (%p198) target = $region36
      $region35: #{tpu_custom_call.1} parent=5 // pred_region
        %s202 = ssub.s32 %s16, 1
        %s203 = sand.u32 %s43, 1
        %s204 = scalar_lea.sflag [#allocation3], %s203
        %s205 = sand.u32 %s43, 1
        %s206 = smul.addr %s205, 16
        %s207 = scalar_lea.vmem [#allocation2], %s206
        // Predicated region
        $region37: #{tpu_custom_call.1} parent=35 // pred_check
          %p208 = pneg %p56
        $region38: #{tpu_custom_call.1} parent=35 // pred_check_branch
          %210 = sbr.rel (%p208) target = $region40
        $region39: #{tpu_custom_call.1} parent=35 // pred_region
          %211 = dma.done %s204, 256
        $region40: #{tpu_custom_call.1} parent=35 // pred_fallthru
          _
        %s212 = sand.u32 %s43, 1
        %s213 = scalar_lea.sflag [#allocation3], %s212
        %s214 = sand.u32 %s43, 1
        %s215 = smul.addr %s214, 16
        %s216 = scalar_lea.vmem [#allocation2], %s215
        %p217 = pneg %p56
        %p218 = pneg %p53
        %p219 = pneg %p77
        %p220 = pneg %p74
        %p221 = pneg %p98
        %p222 = pneg %p95
        %p223 = pneg %p119
        %p224 = pneg %p116
        %p225 = pneg %p147
        %p226 = pneg %p144
        %s227 = sand.u32 %s134, 1
        %s228 = scalar_lea.sflag [#allocation4], %s227
        %s229 = sand.u32 %s134, 1
        %s230 = smul.addr %s229, 32
        %s231 = scalar_lea.vmem [#allocation5], %s230
        %s232 = smul.u32 4, %s26
        %s233 = smul.u32 4, %s26
        %v234 = vld [vmem:[%s207] sm:$0xff]
        %v235 = vld [vmem:[%s207 + $0x8] sm:$0xff]
        %v236 = vld [vmem:[%s2] sm:$0xf]
        %238 = vset.pattern.permute.xlu0 0
        %239 = vperm.xlu0 %238, %v236
        %v240 = vpop.permute.xlu0 %239
        %v242 = vunpack.c.l.s4 839922192
        %v243 = vunpack.c.0.s8 %v242
        %v244 = vlaneseq
        %v245 = vshrl.u32 %v244, 7
        %v246 = vsub.s32 %v243, %v245
        %v247 = vrot.slane %v240, %v246
        %v249 = vmul.f32 %v234, %v247
        %v250 = vmul.f32 %v235, %v247
        %v251 = vld [vmem:[%s3] sm:$0xf]
        %253 = vset.pattern.permute.xlu0 0
        %254 = vperm.xlu0 %253, %v251
        %v255 = vpop.permute.xlu0 %254
        %v257 = vunpack.c.l.s4 839922192
        %v258 = vunpack.c.0.s8 %v257
        %v259 = vlaneseq
        %v260 = vshrl.u32 %v259, 7
        %v261 = vsub.s32 %v258, %v260
        %v262 = vrot.slane %v255, %v261
        %v264 = vadd.f32 %v249, %v262
        %v265 = vadd.f32 %v250, %v262
        %v266 = vmax.f32 %v264, 0.0
        %v267 = vmax.f32 %v265, 0.0
        %v268 = vld [vmem:[%s1] sm:$0xff]
        %v271 = vcombine.high %v266, %v266
        %v272 = vcombine.high %v267, %v267
        %vm273 = vcmask 31744
        %v275 = vsel %vm273, %v268, 0
        %vm277 = vcmask 1043456
        %v278 = vsel %vm277, %v266, 0
        %v280 = vsel %vm277, %v271, 0
        %v282 = vsel %vm277, %v267, 0
        %v284 = vsel %vm277, %v272, 0
        %286 = vmatprep.subr.mxu0 %v280
        %287 = vmatpush1.msra.mxu0 %v278
        %288 = vmatprep.subr.mxu0 0.0
        %289 = vmatpush1.msra.mxu0 0.0
        %290 = vmatprep.subr.mxu0 0.0
        %291 = vmatpush1.msra.mxu0 0.0
        %292 = vmatprep.subr.mxu0 0.0
        %293 = vmatpush1.msra.mxu0 0.0
        %294 = vmatprep.subr.mxu0 0.0
        %295 = vmatpush1.msra.mxu0 0.0
        %296 = vmatprep.subr.mxu0 0.0
        %297 = vmatpush1.msra.mxu0 0.0
        %298 = vmatprep.subr.mxu0 0.0
        %299 = vmatpush1.msra.mxu0 0.0
        %300 = vmatprep.subr.mxu0 0.0
        %301 = vmatpush1.msra.mxu0 0.0
        %302 = vmatprep.subr.mxu0 0.0
        %303 = vmatpush1.msra.mxu0 0.0
        %304 = vmatprep.subr.mxu0 0.0
        %305 = vmatpush1.msra.mxu0 0.0
        %306 = vmatprep.subr.mxu0 0.0
        %307 = vmatpush1.msra.mxu0 0.0
        %308 = vmatprep.subr.mxu0 0.0
        %309 = vmatpush1.msra.mxu0 0.0
        %310 = vmatprep.subr.mxu0 0.0
        %311 = vmatpush1.msra.mxu0 0.0
        %312 = vmatprep.subr.mxu0 0.0
        %313 = vmatpush1.msra.mxu0 0.0
        %314 = vmatprep.subr.mxu0 0.0
        %315 = vmatpush1.msra.mxu0 0.0
        %316 = vmatprep.subr.mxu0 0.0
        %317 = vmatpush1.msra.mxu0 0.0
        %318 = vmatprep.subr.mxu0 0.0
        %319 = vmatpush1.msra.mxu0 0.0
        %320 = vmatprep.subr.mxu0 0.0
        %321 = vmatpush1.msra.mxu0 0.0
        %322 = vmatprep.subr.mxu0 0.0
        %323 = vmatpush1.msra.mxu0 0.0
        %324 = vmatprep.subr.mxu0 0.0
        %325 = vmatpush1.msra.mxu0 0.0
        %326 = vmatprep.subr.mxu0 0.0
        %327 = vmatpush1.msra.mxu0 0.0
        %328 = vmatprep.subr.mxu0 0.0
        %329 = vmatpush1.msra.mxu0 0.0
        %330 = vmatprep.subr.mxu0 0.0
        %331 = vmatpush1.msra.mxu0 0.0
        %332 = vmatprep.subr.mxu0 0.0
        %333 = vmatpush1.msra.mxu0 0.0
        %334 = vmatprep.subr.mxu0 0.0
        %335 = vmatpush1.msra.mxu0 0.0
        %336 = vmatprep.subr.mxu0 0.0
        %337 = vmatpush1.msra.mxu0 0.0
        %338 = vmatprep.subr.mxu0 0.0
        %339 = vmatpush1.msra.mxu0 0.0
        %340 = vmatprep.subr.mxu0 0.0
        %341 = vmatpush1.msra.mxu0 0.0
        %342 = vmatprep.subr.mxu0 0.0
        %343 = vmatpush1.msra.mxu0 0.0
        %344 = vmatprep.subr.mxu0 0.0
        %345 = vmatpush1.msra.mxu0 0.0
        %346 = vmatprep.subr.mxu0 0.0
        %347 = vmatpush1.msra.mxu0 0.0
        %348 = vmatprep.subr.mxu0 0.0
        %349 = vmatpush1.msra.mxu0 0.0
        %350 = vmatprep.mubr.f32.mxu0 0.0
        %351 = vmatmul.mubr.f32.gmra.mrb[0].mxu0 %v275
        %v352 = vpop.f32.mrb[0].mxu0
        %v353 = vadd.f32 0.0, %v352
        %v354 = vpop.f32.mrb[0].mxu0
        %v355 = vadd.f32 0.0, %v354
        %356 = vdwg.mxu0
        %357 = vmatprep.subr.mxu0 %v284
        %358 = vmatpush1.msra.mxu0 %v282
        %359 = vmatprep.subr.mxu0 0.0
        %360 = vmatpush1.msra.mxu0 0.0
        %361 = vmatprep.subr.mxu0 0.0
        %362 = vmatpush1.msra.mxu0 0.0
        %363 = vmatprep.subr.mxu0 0.0
        %364 = vmatpush1.msra.mxu0 0.0
        %365 = vmatprep.subr.mxu0 0.0
        %366 = vmatpush1.msra.mxu0 0.0
        %367 = vmatprep.subr.mxu0 0.0
        %368 = vmatpush1.msra.mxu0 0.0
        %369 = vmatprep.subr.mxu0 0.0
        %370 = vmatpush1.msra.mxu0 0.0
        %371 = vmatprep.subr.mxu0 0.0
        %372 = vmatpush1.msra.mxu0 0.0
        %373 = vmatprep.subr.mxu0 0.0
        %374 = vmatpush1.msra.mxu0 0.0
        %375 = vmatprep.subr.mxu0 0.0
        %376 = vmatpush1.msra.mxu0 0.0
        %377 = vmatprep.subr.mxu0 0.0
        %378 = vmatpush1.msra.mxu0 0.0
        %379 = vmatprep.subr.mxu0 0.0
        %380 = vmatpush1.msra.mxu0 0.0
        %381 = vmatprep.subr.mxu0 0.0
        %382 = vmatpush1.msra.mxu0 0.0
        %383 = vmatprep.subr.mxu0 0.0
        %384 = vmatpush1.msra.mxu0 0.0
        %385 = vmatprep.subr.mxu0 0.0
        %386 = vmatpush1.msra.mxu0 0.0
        %387 = vmatprep.subr.mxu0 0.0
        %388 = vmatpush1.msra.mxu0 0.0
        %389 = vmatprep.subr.mxu0 0.0
        %390 = vmatpush1.msra.mxu0 0.0
        %391 = vmatprep.subr.mxu0 0.0
        %392 = vmatpush1.msra.mxu0 0.0
        %393 = vmatprep.subr.mxu0 0.0
        %394 = vmatpush1.msra.mxu0 0.0
        %395 = vmatprep.subr.mxu0 0.0
        %396 = vmatpush1.msra.mxu0 0.0
        %397 = vmatprep.subr.mxu0 0.0
        %398 = vmatpush1.msra.mxu0 0.0
        %399 = vmatprep.subr.mxu0 0.0
        %400 = vmatpush1.msra.mxu0 0.0
        %401 = vmatprep.subr.mxu0 0.0
        %402 = vmatpush1.msra.mxu0 0.0
        %403 = vmatprep.subr.mxu0 0.0
        %404 = vmatpush1.msra.mxu0 0.0
        %405 = vmatprep.subr.mxu0 0.0
        %406 = vmatpush1.msra.mxu0 0.0
        %407 = vmatprep.subr.mxu0 0.0
        %408 = vmatpush1.msra.mxu0 0.0
        %409 = vmatprep.subr.mxu0 0.0
        %410 = vmatpush1.msra.mxu0 0.0
        %411 = vmatprep.subr.mxu0 0.0
        %412 = vmatpush1.msra.mxu0 0.0
        %413 = vmatprep.subr.mxu0 0.0
        %414 = vmatpush1.msra.mxu0 0.0
        %415 = vmatprep.subr.mxu0 0.0
        %416 = vmatpush1.msra.mxu0 0.0
        %417 = vmatprep.subr.mxu0 0.0
        %418 = vmatpush1.msra.mxu0 0.0
        %419 = vmatprep.subr.mxu0 0.0
        %420 = vmatpush1.msra.mxu0 0.0
        %421 = vmatprep.mubr.f32.mxu0 0.0
        %422 = vmatmul.mubr.f32.gmra.mrb[0].mxu0 %v275
        %v423 = vpop.f32.mrb[0].mxu0
        %v424 = vadd.f32 0.0, %v423
        %v425 = vpop.f32.mrb[0].mxu0
        %v426 = vadd.f32 0.0, %v425
        %427 = vdwg.mxu0
        %428 = vst [vmem:[%s231] sm:$0xff] %v353
        %429 = vst [vmem:[%s231 + $0x8] sm:$0xff] %v355
        %430 = vst [vmem:[%s231 + $0x10] sm:$0xff] %v424
        %431 = vst [vmem:[%s231 + $0x18] sm:$0xff] %v426
        %s432 = sand.u32 %s134, 1
        %s433 = scalar_lea.sflag [#allocation4], %s432
        %s434 = sand.u32 %s134, 1
        %s435 = smul.addr %s434, 32
        %s436 = scalar_lea.vmem [#allocation5], %s435
        // Predicated region
        $region41: #{tpu_custom_call.1} parent=35 // pred_check
          %p437 = pneg %p144
        $region42: #{tpu_custom_call.1} parent=35 // pred_check_branch
          %439 = sbr.rel (%p437) target = $region44
        $region43: #{tpu_custom_call.1} parent=35 // pred_region
          %s440 = smul.u32 4, %s26
          %s442 = ssub.s32 512, 512
          %443 = vsyncadd %s433, %s442
          %s444 = smul.addr %s25, 4
          %s445 = sadd.s32 %s440, %s444
          %s446 = smul.addr %s445, 128
          %s447 = scalar_lea.hbm %s4, %s446
          %s449 = sshll.u32 %s436, 4
          %s450 = int_to_ptr.vmem [resolvable:$true] %s449
          %452 = dma.vmem_to_hbm [thread:$0]  %s450, 512, %s447, %s433
        $region44: #{tpu_custom_call.1} parent=35 // pred_fallthru
          _
      $region36: #{tpu_custom_call.1} parent=5 // pred_fallthru
        _
      %p453 = scmp.le.s32.totalorder 2, %s16
      // Predicated region
      $region45: #{tpu_custom_call.1} parent=5 // pred_check
        %p454 = pneg %p453
      $region46: #{tpu_custom_call.1} parent=5 // pred_check_branch
        %456 = sbr.rel (%p454) target = $region48
      $region47: #{tpu_custom_call.1} parent=5 // pred_region
        %s457 = ssub.s32 %s16, 2
        // Predicated region
        $region49: #{tpu_custom_call.1} parent=47 // pred_check
          %p458 = pneg %p150
        $region50: #{tpu_custom_call.1} parent=47 // pred_check_branch
          %460 = sbr.rel (%p458) target = $region52
        $region51: #{tpu_custom_call.1} parent=47 // pred_region
          %s461 = sand.u32 %s135, 1
          %s462 = scalar_lea.sflag [#allocation4], %s461
          %s463 = sand.u32 %s135, 1
          %s464 = smul.addr %s463, 32
          %s465 = scalar_lea.vmem [#allocation5], %s464
          %466 = dma.done %s462, 512
        $region52: #{tpu_custom_call.1} parent=47 // pred_fallthru
          _
      $region48: #{tpu_custom_call.1} parent=5 // pred_fallthru
        _
    $region6: #{tpu_custom_call.1} parent=1 // loop_footer
      %s20 = sadd.s32 1, %s16
    $region7: #{tpu_custom_call.1} parent=1 // loop_footer_branch
      %15 = sbr.rel target = $region3
    $region8: #{tpu_custom_call.1} parent=1 // loop_exit
      _
    %467 = vsyncpa [#allocation3], 1
    %s468 = scalar_lea.sflag [#allocation3], 1
    %469 = vsyncpa %s468, 1
    %470 = vsyncpa [#allocation4], 1
    %s471 = scalar_lea.sflag [#allocation4], 1
    %472 = vsyncpa %s471, 1

</llo_original>
